<compile_context>
chip_gen: v5e
topology: v5e:2x2
jax: 0.10.0
libtpu: 0.0.40
codegen_flags: <defaults>
</compile_context>

<pallas_src>
import jax
import jax.numpy as jnp
from jax.experimental import pallas as pl
from jax.experimental.pallas import tpu as pltpu

_SUBLANE = 16  # bf16 packed sublane tile (2 rows per 32-bit sublane)


def _round_up(x, m):
    return ((x + m - 1) // m) * m


def _round_down(x, m):
    return max(m, (x // m) * m)


def _tpu_vmem_capacity_bytes():
    """Best-effort per-core VMEM capacity; conservative (v7x-sized) fallback."""
    try:
        info = pltpu.get_tpu_info()
        cap = getattr(info, "vmem_capacity_bytes", None)
        if cap:
            return int(cap)
    except Exception:
        pass
    return 64 << 20


def _vmem_bytes(tb, D, H, O, x_bytes, w_bytes, out_bytes, weight_bufs):
    return (2 * tb * D * x_bytes                     # x tile, double-buffered
            + 2 * tb * O * out_bytes                 # out tile, double-buffered
            + weight_bufs * (D * H + H * O) * w_bytes
            + weight_bufs * (H + O) * 4              # f32 biases
            + 3 * tb * max(H, O) * 4)                # f32 intermediates headroom


def mlp_meger_kernel(x_ref, w1_ref, b1_ref, w2_ref, b2_ref, o_ref):
    # x_ref:  (tb, D) native dtype   w1_ref: (D, H) bf16   b1_ref: (1, H) f32
    # w2_ref: (H, O)  bf16           b2_ref: (1, O) f32    o_ref:  (tb, O)
    cdt = w1_ref.dtype
    # Cast x on the VPU (free in this mem-bound regime) instead of paying a
    # separate wrapper-side HBM pass.
    x = x_ref[...].astype(cdt)
    h = jnp.tanh(
        jnp.dot(x, w1_ref[...], preferred_element_type=jnp.float32) + b1_ref[...]
    )
    out = jnp.tanh(
        jnp.dot(h.astype(cdt), w2_ref[...], preferred_element_type=jnp.float32)
        + b2_ref[...]
    )
    o_ref[...] = out.astype(o_ref.dtype)


def mlp_meger(x, w1, b1, w2, b2, *, tile_b=2048,
              compute_dtype=jnp.bfloat16, out_dtype=None):
    """x: (B, D); w1: (D, H); b1: (H,); w2: (H, O); b2: (O,) -> (B, O).

    For best performance pass w1/w2 already cast to `compute_dtype` (cache the
    cast at init instead of paying an extra HBM read+write every call).
    """
    B, D = x.shape
    H = w1.shape[1]
    O = w2.shape[1]
    out_dtype = out_dtype or x.dtype

    # --- dtype plumbing -----------------------------------------------------
    # x stays in its native dtype (cast happens in-kernel); weights are only
    # cast here if the caller did not pre-cast them.
    w1c = w1 if w1.dtype == compute_dtype else w1.astype(compute_dtype)
    w2c = w2 if w2.dtype == compute_dtype else w2.astype(compute_dtype)
    b1_2d = b1.reshape(1, H).astype(jnp.float32)
    b2_2d = b2.reshape(1, O).astype(jnp.float32)

    x_bytes = jnp.dtype(x.dtype).itemsize
    w_bytes = jnp.dtype(compute_dtype).itemsize
    out_bytes = jnp.dtype(out_dtype).itemsize

    # --- generation-aware budgets -------------------------------------------
    vmem_cap = _tpu_vmem_capacity_bytes()
    small_vmem = vmem_cap <= (80 << 20)        # v7x (64 MiB) vs v5e/v6e (128 MiB)
    budget = (44 << 20) if small_vmem else (96 << 20)
    hard_cap = (60 << 20) if small_vmem else (100 << 20)
    # v7x megacore: >= 4 grid steps so each TensorCore gets >= 2 pipeline steps
    # (keeps DMA/compute overlap alive); v5e/v6e single-core: >= 2 is enough.
    min_steps = 4 if small_vmem else 2

    # --- tile selection -------------------------------------------------------
    tb = _round_up(max(tile_b, _SUBLANE), _SUBLANE)
    tb = min(tb, _round_up(max(pl.cdiv(B, min_steps), _SUBLANE), _SUBLANE))
    if tb >= 256:
        tb = _round_down(tb, 256)              # MXU-friendly M on v6e/v7x
    while tb > _SUBLANE and _vmem_bytes(tb, D, H, O, x_bytes, w_bytes,
                                        out_bytes, 1) > budget:
        tb = _round_down(tb // 2, _SUBLANE)
    # No jnp.pad: cdiv grid + masked writeback handle the last partial block.
    grid_b = pl.cdiv(B, tb)

    def _vmem_limit(weight_bufs):
        est = _vmem_bytes(tb, D, H, O, x_bytes, w_bytes, out_bytes, weight_bufs)
        if est <= (12 << 20):                  # fits the smallest scoped default
            return None
        return int(min(_round_up(est * 5 // 4, 1 << 20), hard_cap))

    def _build(single_buffer_weights):
        wmode = ({"pipeline_mode": pl.Buffered(1)}
                 if single_buffer_weights else {})
        in_specs = [
            pl.BlockSpec((tb, D), lambda i: (i, 0)),           # x tile (pipelined)
            pl.BlockSpec((D, H), lambda i: (0, 0), **wmode),   # W1 (grid-invariant)
            pl.BlockSpec((1, H), lambda i: (0, 0), **wmode),   # b1
            pl.BlockSpec((H, O), lambda i: (0, 0), **wmode),   # W2 (grid-invariant)
            pl.BlockSpec((1, O), lambda i: (0, 0), **wmode),   # b2
        ]
        return pl.pallas_call(
            mlp_meger_kernel,
            out_shape=jax.ShapeDtypeStruct((B, O), out_dtype),
            grid_spec=pltpu.PrefetchScalarGridSpec(
                num_scalar_prefetch=0,
                grid=(grid_b,),
                in_specs=in_specs,
                out_specs=pl.BlockSpec((tb, O), lambda i: (i, 0)),
            ),
            compiler_params=pltpu.CompilerParams(
                dimension_semantics=("parallel",),
                vmem_limit_bytes=_vmem_limit(1 if single_buffer_weights else 2),
            ),
        )

    try:
        # Single-buffer the grid-invariant weight/bias blocks (fetched once).
        out = _build(True)(x, w1c, b1_2d, w2c, b2_2d)
    except Exception:
        # pl.Buffered(1) rejected by this jax/Mosaic version -> default
        # double-buffering (identical results, slightly larger VMEM footprint).
        out = _build(False)(x, w1c, b1_2d, w2c, b2_2d)
    return out


def init_linear_params(key, in_features, out_features, dtype=jnp.float32):
    """torch.nn.Linear default init (uniform +/- 1/sqrt(fan_in)), pre-transposed."""
    kw, kb = jax.random.split(key)
    bound = 1.0 / (in_features ** 0.5)
    w_t = jax.random.uniform(kw, (in_features, out_features), dtype,
                             minval=-bound, maxval=bound)
    b = jax.random.uniform(kb, (out_features,), dtype,
                           minval=-bound, maxval=bound)
    return w_t, b


def reference_forward(x, w1, b1, w2, b2):
    h = jnp.tanh(x @ w1 + b1)
    return jnp.tanh(h @ w2 + b2)


if __name__ == "__main__":
    # Small shapes consistent with the module: hidden = input_size // 4.
    batch = 16
    input_size = 256
    hidden = input_size // 4     # 64
    out_size = 64

    key = jax.random.PRNGKey(0)
    kx, k1, k2 = jax.random.split(key, 3)

    x = jax.random.normal(kx, (batch, input_size), jnp.float32)
    w1, b1 = init_linear_params(k1, input_size, hidden)
    w2, b2 = init_linear_params(k2, hidden, out_size)

    # Hoisted per-call weight cast: cache bf16 weights once (as a module would
    # at init) instead of re-casting every forward.
    w1_c = w1.astype(jnp.bfloat16)
    w2_c = w2.astype(jnp.bfloat16)

    out = mlp_meger(x, w1_c, b1, w2_c, b2)
    out = jax.block_until_ready(out)

    ref = reference_forward(x, w1, b1, w2, b2)
    assert out.shape == (batch, out_size)
    # bf16 weights / in-kernel bf16 x cast -> ~1e-2-level error vs f32 reference.
    max_err = float(jnp.max(jnp.abs(out.astype(jnp.float32) - ref)))
    assert max_err < 5e-2, f"mismatch vs reference (max abs err {max_err})"

    print("KERNEL_OK")
</pallas_src>

<mosaic_0001>
module attributes {stable_mosaic.version = 11 : i64} {
  func.func @mlp_meger_kernel(%arg0: i32, %arg1: memref<16x256xf32, #tpu.memory_space<vmem>>, %arg2: memref<256x64xbf16, #tpu.memory_space<vmem>>, %arg3: memref<1x64xf32, #tpu.memory_space<vmem>>, %arg4: memref<64x64xbf16, #tpu.memory_space<vmem>>, %arg5: memref<1x64xf32, #tpu.memory_space<vmem>>, %arg6: memref<16x64xf32, #tpu.memory_space<vmem>>) attributes {dimension_semantics = [#tpu.dimension_semantics<parallel>], iteration_bounds = array<i64: 1>, scalar_prefetch = 0 : i64, scratch_operands = 0 : i64, tpu.core_type = #tpu.core_type<tc>, window_params = [{transform_indices = @transform_0, window_bounds = array<i64: 16, 256>}, {pipeline_mode = #tpu.pipeline_mode<synchronous>, transform_indices = @transform_1, window_bounds = array<i64: 256, 64>}, {pipeline_mode = #tpu.pipeline_mode<synchronous>, transform_indices = @transform_2, window_bounds = array<i64: 1, 64>}, {pipeline_mode = #tpu.pipeline_mode<synchronous>, transform_indices = @transform_3, window_bounds = array<i64: 64, 64>}, {pipeline_mode = #tpu.pipeline_mode<synchronous>, transform_indices = @transform_4, window_bounds = array<i64: 1, 64>}, {transform_indices = @transform_5, window_bounds = array<i64: 16, 64>}]} {
    %c0 = arith.constant 0 : index
    %c0_0 = arith.constant 0 : index
    %0 = vector.load %arg1[%c0, %c0_0] : memref<16x256xf32, #tpu.memory_space<vmem>>, vector<16x256xf32>
    %1 = arith.truncf %0 : vector<16x256xf32> to vector<16x256xbf16>
    %c0_1 = arith.constant 0 : index
    %c0_2 = arith.constant 0 : index
    %2 = vector.load %arg2[%c0_1, %c0_2] : memref<256x64xbf16, #tpu.memory_space<vmem>>, vector<256x64xbf16>
    %cst = arith.constant dense<0.000000e+00> : vector<16x64xf32>
    %3 = tpu.matmul %1, %2, %cst {dimension_numbers = #tpu.dot_dimension_numbers<[1], [0], [0], [1], [0, 0, 1, 1], [], []>} : vector<16x256xbf16>, vector<256x64xbf16>, vector<16x64xf32> -> vector<16x64xf32>
    %c0_3 = arith.constant 0 : index
    %c0_4 = arith.constant 0 : index
    %4 = vector.load %arg3[%c0_3, %c0_4] : memref<1x64xf32, #tpu.memory_space<vmem>>, vector<1x64xf32>
    %5 = vector.broadcast %4 : vector<1x64xf32> to vector<16x64xf32>
    %6 = arith.addf %3, %5 : vector<16x64xf32>
    %7 = math.tanh %6 : vector<16x64xf32>
    %8 = arith.truncf %7 : vector<16x64xf32> to vector<16x64xbf16>
    %c0_5 = arith.constant 0 : index
    %c0_6 = arith.constant 0 : index
    %9 = vector.load %arg4[%c0_5, %c0_6] : memref<64x64xbf16, #tpu.memory_space<vmem>>, vector<64x64xbf16>
    %cst_7 = arith.constant dense<0.000000e+00> : vector<16x64xf32>
    %10 = tpu.matmul %8, %9, %cst_7 {dimension_numbers = #tpu.dot_dimension_numbers<[1], [0], [0], [1], [0, 0, 1, 1], [], []>} : vector<16x64xbf16>, vector<64x64xbf16>, vector<16x64xf32> -> vector<16x64xf32>
    %c0_8 = arith.constant 0 : index
    %c0_9 = arith.constant 0 : index
    %11 = vector.load %arg5[%c0_8, %c0_9] : memref<1x64xf32, #tpu.memory_space<vmem>>, vector<1x64xf32>
    %12 = vector.broadcast %11 : vector<1x64xf32> to vector<16x64xf32>
    %13 = arith.addf %10, %12 : vector<16x64xf32>
    %14 = math.tanh %13 : vector<16x64xf32>
    %c0_10 = arith.constant 0 : index
    %c0_11 = arith.constant 0 : index
    %15 = vector.load %arg6[%c0_10, %c0_11] : memref<16x64xf32, #tpu.memory_space<vmem>>, vector<16x64xf32>
    tpu.vector_store %arg6[%c0_10, %c0_11], %14 {strides = array<i32>} : memref<16x64xf32, #tpu.memory_space<vmem>>, vector<16x64xf32>,
    return
  }
  func.func @transform_0(%arg0: i32) -> (i32, i32) {
    %c0_i32 = arith.constant 0 : i32
    %c0_i32_0 = arith.constant 0 : i32
    return %arg0, %c0_i32 : i32, i32
  }
  func.func @transform_1(%arg0: i32) -> (i32, i32) {
    %c0_i32 = arith.constant 0 : i32
    %c0_i32_0 = arith.constant 0 : i32
    %c0_i32_1 = arith.constant 0 : i32
    return %c0_i32, %c0_i32_0 : i32, i32
  }
  func.func @transform_2(%arg0: i32) -> (i32, i32) {
    %c0_i32 = arith.constant 0 : i32
    %c0_i32_0 = arith.constant 0 : i32
    %c0_i32_1 = arith.constant 0 : i32
    return %c0_i32, %c0_i32_0 : i32, i32
  }
  func.func @transform_3(%arg0: i32) -> (i32, i32) {
    %c0_i32 = arith.constant 0 : i32
    %c0_i32_0 = arith.constant 0 : i32
    %c0_i32_1 = arith.constant 0 : i32
    return %c0_i32, %c0_i32_0 : i32, i32
  }
  func.func @transform_4(%arg0: i32) -> (i32, i32) {
    %c0_i32 = arith.constant 0 : i32
    %c0_i32_0 = arith.constant 0 : i32
    %c0_i32_1 = arith.constant 0 : i32
    return %c0_i32, %c0_i32_0 : i32, i32
  }
  func.func @transform_5(%arg0: i32) -> (i32, i32) {
    %c0_i32 = arith.constant 0 : i32
    %c0_i32_0 = arith.constant 0 : i32
    return %arg0, %c0_i32 : i32, i32
  }
}

module attributes {stable_mosaic.version = 11 : i64} {
  func.func @mlp_meger_kernel(%arg0: i32, %arg1: memref<16x256xf32, #tpu.memory_space<vmem>>, %arg2: memref<256x64xbf16, #tpu.memory_space<vmem>>, %arg3: memref<1x64xf32, #tpu.memory_space<vmem>>, %arg4: memref<64x64xbf16, #tpu.memory_space<vmem>>, %arg5: memref<1x64xf32, #tpu.memory_space<vmem>>, %arg6: memref<16x64xf32, #tpu.memory_space<vmem>>) attributes {dimension_semantics = [#tpu.dimension_semantics<parallel>], iteration_bounds = array<i64: 1>, scalar_prefetch = 0 : i64, scratch_operands = 0 : i64, tpu.core_type = #tpu.core_type<tc>, window_params = [{transform_indices = @transform_0, window_bounds = array<i64: 16, 256>}, {pipeline_mode = #tpu.pipeline_mode<synchronous>, transform_indices = @transform_1, window_bounds = array<i64: 256, 64>}, {pipeline_mode = #tpu.pipeline_mode<synchronous>, transform_indices = @transform_2, window_bounds = array<i64: 1, 64>}, {pipeline_mode = #tpu.pipeline_mode<synchronous>, transform_indices = @transform_3, window_bounds = array<i64: 64, 64>}, {pipeline_mode = #tpu.pipeline_mode<synchronous>, transform_indices = @transform_4, window_bounds = array<i64: 1, 64>}, {transform_indices = @transform_5, window_bounds = array<i64: 16, 64>}]} {
    %c0 = arith.constant 0 : index
    %c0_0 = arith.constant 0 : index
    %0 = vector.load %arg1[%c0, %c0_0] : memref<16x256xf32, #tpu.memory_space<vmem>>, vector<16x256xf32>
    %1 = arith.truncf %0 : vector<16x256xf32> to vector<16x256xbf16>
    %c0_1 = arith.constant 0 : index
    %c0_2 = arith.constant 0 : index
    %2 = vector.load %arg2[%c0_1, %c0_2] : memref<256x64xbf16, #tpu.memory_space<vmem>>, vector<256x64xbf16>
    %cst = arith.constant dense<0.000000e+00> : vector<16x64xf32>
    %3 = tpu.matmul %1, %2, %cst {dimension_numbers = #tpu.dot_dimension_numbers<[1], [0], [0], [1], [0, 0, 1, 1], [], []>} : vector<16x256xbf16>, vector<256x64xbf16>, vector<16x64xf32> -> vector<16x64xf32>
    %c0_3 = arith.constant 0 : index
    %c0_4 = arith.constant 0 : index
    %4 = vector.load %arg3[%c0_3, %c0_4] : memref<1x64xf32, #tpu.memory_space<vmem>>, vector<1x64xf32>
    %5 = vector.broadcast %4 : vector<1x64xf32> to vector<16x64xf32>
    %6 = arith.addf %3, %5 : vector<16x64xf32>
    %7 = math.tanh %6 : vector<16x64xf32>
    %8 = arith.truncf %7 : vector<16x64xf32> to vector<16x64xbf16>
    %c0_5 = arith.constant 0 : index
    %c0_6 = arith.constant 0 : index
    %9 = vector.load %arg4[%c0_5, %c0_6] : memref<64x64xbf16, #tpu.memory_space<vmem>>, vector<64x64xbf16>
    %cst_7 = arith.constant dense<0.000000e+00> : vector<16x64xf32>
    %10 = tpu.matmul %8, %9, %cst_7 {dimension_numbers = #tpu.dot_dimension_numbers<[1], [0], [0], [1], [0, 0, 1, 1], [], []>} : vector<16x64xbf16>, vector<64x64xbf16>, vector<16x64xf32> -> vector<16x64xf32>
    %c0_8 = arith.constant 0 : index
    %c0_9 = arith.constant 0 : index
    %11 = vector.load %arg5[%c0_8, %c0_9] : memref<1x64xf32, #tpu.memory_space<vmem>>, vector<1x64xf32>
    %12 = vector.broadcast %11 : vector<1x64xf32> to vector<16x64xf32>
    %13 = arith.addf %10, %12 : vector<16x64xf32>
    %14 = math.tanh %13 : vector<16x64xf32>
    %c0_10 = arith.constant 0 : index
    %c0_11 = arith.constant 0 : index
    %15 = vector.load %arg6[%c0_10, %c0_11] : memref<16x64xf32, #tpu.memory_space<vmem>>, vector<16x64xf32>
    tpu.vector_store %arg6[%c0_10, %c0_11], %14 {strides = array<i32>} : memref<16x64xf32, #tpu.memory_space<vmem>>, vector<16x64xf32>,
    return
  }
  func.func @transform_0(%arg0: i32) -> (i32, i32) {
    %c0_i32 = arith.constant 0 : i32
    %c0_i32_0 = arith.constant 0 : i32
    return %arg0, %c0_i32 : i32, i32
  }
  func.func @transform_1(%arg0: i32) -> (i32, i32) {
    %c0_i32 = arith.constant 0 : i32
    %c0_i32_0 = arith.constant 0 : i32
    %c0_i32_1 = arith.constant 0 : i32
    return %c0_i32, %c0_i32_0 : i32, i32
  }
  func.func @transform_2(%arg0: i32) -> (i32, i32) {
    %c0_i32 = arith.constant 0 : i32
    %c0_i32_0 = arith.constant 0 : i32
    %c0_i32_1 = arith.constant 0 : i32
    return %c0_i32, %c0_i32_0 : i32, i32
  }
  func.func @transform_3(%arg0: i32) -> (i32, i32) {
    %c0_i32 = arith.constant 0 : i32
    %c0_i32_0 = arith.constant 0 : i32
    %c0_i32_1 = arith.constant 0 : i32
    return %c0_i32, %c0_i32_0 : i32, i32
  }
  func.func @transform_4(%arg0: i32) -> (i32, i32) {
    %c0_i32 = arith.constant 0 : i32
    %c0_i32_0 = arith.constant 0 : i32
    %c0_i32_1 = arith.constant 0 : i32
    return %c0_i32, %c0_i32_0 : i32, i32
  }
  func.func @transform_5(%arg0: i32) -> (i32, i32) {
    %c0_i32 = arith.constant 0 : i32
    %c0_i32_0 = arith.constant 0 : i32
    return %arg0, %c0_i32 : i32, i32
  }
}

</mosaic_0001>

<llo_original>
// kernel: tpu_custom_call.1
$region0: #{tpu_custom_call.1}
  #allocation0 [shape = 'u32[]', space=smem, size = 0x4, offset = 0x4, fixed_abs, tag = 'smem constant byte address 0x4 - core index']
  #allocation1 [shape = 'u32[72,128]{1,0:T(1,128)}', space=vmem, size = 0x9000, scoped, tag = 'internal scratch']
  %s0 = inlined_call_operand.vmem [shape: f32[16,256], index: 0, kind: input, shape index: {}]
  %s1 = inlined_call_operand.vmem [shape: bf16[256,64], index: 1, kind: input, shape index: {}]
  %s2 = inlined_call_operand.vmem [shape: f32[1,64], index: 2, kind: input, shape index: {}]
  %s3 = inlined_call_operand.vmem [shape: bf16[64,64], index: 3, kind: input, shape index: {}]
  %s4 = inlined_call_operand.vmem [shape: f32[1,64], index: 4, kind: input, shape index: {}]
  %s5 = inlined_call_operand.hbm [shape: f32[16,64], index: 5, kind: output, shape index: {}]
  %s6 = sld [smem:[#allocation0]]
  $region30: #{tpu_custom_call.1} parent=0
    _
  %s8 = ssub.s32 1, %s6
  %s9 = scalar_select 0, %s8, %s6
  $region1: #{tpu_custom_call.1} parent=0
    #allocation2 [shape = 'u8[8192]{0}', space=vmem, size = 0x2000, scoped, tag = 'output window, operand 0, single buffered']
    #allocation3 [shape = 's32[1]{0}', space=sflag, size = 0x4, scoped, tag = 'scoped memory for tpu_custom_call.1']
    %10 = vsyncpa [#allocation3], 0
    // Predicated region
    $region2: #{tpu_custom_call.1} parent=1 // pred_check
      _
    $region3: #{tpu_custom_call.1} parent=1 // pred_check_branch
      %12 = sbr.rel (0) target = $region5
    $region4: #{tpu_custom_call.1} parent=1 // pred_region
      _
    $region5: #{tpu_custom_call.1} parent=1 // pred_fallthru
      _
    // Predicated region
    $region6: #{tpu_custom_call.1} parent=1 // pred_check
      _
    $region7: #{tpu_custom_call.1} parent=1 // pred_check_branch
      %14 = sbr.rel (0) target = $region9
    $region8: #{tpu_custom_call.1} parent=1 // pred_region
      _
    $region9: #{tpu_custom_call.1} parent=1 // pred_fallthru
      _
    // Predicated region
    $region10: #{tpu_custom_call.1} parent=1 // pred_check
      _
    $region11: #{tpu_custom_call.1} parent=1 // pred_check_branch
      %16 = sbr.rel (0) target = $region13
    $region12: #{tpu_custom_call.1} parent=1 // pred_region
      _
    $region13: #{tpu_custom_call.1} parent=1 // pred_fallthru
      _
    // Predicated region
    $region14: #{tpu_custom_call.1} parent=1 // pred_check
      _
    $region15: #{tpu_custom_call.1} parent=1 // pred_check_branch
      %18 = sbr.rel (0) target = $region17
    $region16: #{tpu_custom_call.1} parent=1 // pred_region
      _
    $region17: #{tpu_custom_call.1} parent=1 // pred_fallthru
      _
    // Predicated region
    $region18: #{tpu_custom_call.1} parent=1 // pred_check
      _
    $region19: #{tpu_custom_call.1} parent=1 // pred_check_branch
      %20 = sbr.rel (0) target = $region21
    $region20: #{tpu_custom_call.1} parent=1 // pred_region
      _
    $region21: #{tpu_custom_call.1} parent=1 // pred_fallthru
      _
    %v22 = vld [vmem:[%s0] sm:$0xff]
    %v23 = vld [vmem:[%s0 + $0x8] sm:$0xff]
    %v24 = vld [vmem:[%s0 + $0x10] sm:$0xff]
    %v25 = vld [vmem:[%s0 + $0x18] sm:$0xff]
    %v26 = vpack.c.bf16 %v24, %v22
    %v27 = vpack.c.bf16 %v25, %v23
    %v28 = vld [vmem:[%s1] sm:$0xf]
    %v29 = vld [vmem:[%s1 + $0x4] sm:$0xf]
    %v30 = vld [vmem:[%s1 + $0x8] sm:$0xf]
    %v31 = vld [vmem:[%s1 + $0xc] sm:$0xf]
    %v32 = vld [vmem:[%s1 + $0x10] sm:$0xf]
    %v33 = vld [vmem:[%s1 + $0x14] sm:$0xf]
    %v34 = vld [vmem:[%s1 + $0x18] sm:$0xf]
    %v35 = vld [vmem:[%s1 + $0x1c] sm:$0xf]
    %v36 = vld [vmem:[%s1 + $0x20] sm:$0xf]
    %v37 = vld [vmem:[%s1 + $0x24] sm:$0xf]
    %v38 = vld [vmem:[%s1 + $0x28] sm:$0xf]
    %v39 = vld [vmem:[%s1 + $0x2c] sm:$0xf]
    %v40 = vld [vmem:[%s1 + $0x30] sm:$0xf]
    %v41 = vld [vmem:[%s1 + $0x34] sm:$0xf]
    %v42 = vld [vmem:[%s1 + $0x38] sm:$0xf]
    %v43 = vld [vmem:[%s1 + $0x3c] sm:$0xf]
    %v44 = vld [vmem:[%s1 + $0x40] sm:$0xf]
    %v45 = vld [vmem:[%s1 + $0x44] sm:$0xf]
    %v46 = vld [vmem:[%s1 + $0x48] sm:$0xf]
    %v47 = vld [vmem:[%s1 + $0x4c] sm:$0xf]
    %v48 = vld [vmem:[%s1 + $0x50] sm:$0xf]
    %v49 = vld [vmem:[%s1 + $0x54] sm:$0xf]
    %v50 = vld [vmem:[%s1 + $0x58] sm:$0xf]
    %v51 = vld [vmem:[%s1 + $0x5c] sm:$0xf]
    %v52 = vld [vmem:[%s1 + $0x60] sm:$0xf]
    %v53 = vld [vmem:[%s1 + $0x64] sm:$0xf]
    %v54 = vld [vmem:[%s1 + $0x68] sm:$0xf]
    %v55 = vld [vmem:[%s1 + $0x6c] sm:$0xf]
    %v56 = vld [vmem:[%s1 + $0x70] sm:$0xf]
    %v57 = vld [vmem:[%s1 + $0x74] sm:$0xf]
    %v58 = vld [vmem:[%s1 + $0x78] sm:$0xf]
    %v59 = vld [vmem:[%s1 + $0x7c] sm:$0xf]
    %v60 = vld [vmem:[%s2] sm:$0x1]
    %v62 = vperm.slane %v60, 0
    %v96 = vunpack.c.l.b16 %v28
    %v97 = vunpack.c.l.b16 %v29
    %v98 = vunpack.c.l.b16 %v30
    %v99 = vunpack.c.l.b16 %v31
    %v100 = vunpack.c.l.b16 %v32
    %v101 = vunpack.c.l.b16 %v33
    %v102 = vunpack.c.l.b16 %v34
    %v103 = vunpack.c.l.b16 %v35
    %v104 = vunpack.c.l.b16 %v36
    %v105 = vunpack.c.l.b16 %v37
    %v106 = vunpack.c.l.b16 %v38
    %v107 = vunpack.c.l.b16 %v39
    %v108 = vunpack.c.l.b16 %v40
    %v109 = vunpack.c.l.b16 %v41
    %v110 = vunpack.c.l.b16 %v42
    %v111 = vunpack.c.l.b16 %v43
    %v112 = vunpack.c.l.b16 %v44
    %v113 = vunpack.c.l.b16 %v45
    %v114 = vunpack.c.l.b16 %v46
    %v115 = vunpack.c.l.b16 %v47
    %v116 = vunpack.c.l.b16 %v48
    %v117 = vunpack.c.l.b16 %v49
    %v118 = vunpack.c.l.b16 %v50
    %v119 = vunpack.c.l.b16 %v51
    %v120 = vunpack.c.l.b16 %v52
    %v121 = vunpack.c.l.b16 %v53
    %v122 = vunpack.c.l.b16 %v54
    %v123 = vunpack.c.l.b16 %v55
    %v124 = vunpack.c.l.b16 %v56
    %v125 = vunpack.c.l.b16 %v57
    %v126 = vunpack.c.l.b16 %v58
    %v127 = vunpack.c.l.b16 %v59
    %v128 = vpack.c.b16 %v97, %v96
    %v129 = vpack.c.b16 %v99, %v98
    %v130 = vpack.c.b16 %v101, %v100
    %v131 = vpack.c.b16 %v103, %v102
    %v132 = vpack.c.b16 %v105, %v104
    %v133 = vpack.c.b16 %v107, %v106
    %v134 = vpack.c.b16 %v109, %v108
    %v135 = vpack.c.b16 %v111, %v110
    %v136 = vpack.c.b16 %v113, %v112
    %v137 = vpack.c.b16 %v115, %v114
    %v138 = vpack.c.b16 %v117, %v116
    %v139 = vpack.c.b16 %v119, %v118
    %v140 = vpack.c.b16 %v121, %v120
    %v141 = vpack.c.b16 %v123, %v122
    %v142 = vpack.c.b16 %v125, %v124
    %v143 = vpack.c.b16 %v127, %v126
    %160 = vmatpush.bf16.msra.mxu0 %v135
    %161 = vmatpush.bf16.msra.mxu0 %v134
    %162 = vmatpush.bf16.msra.mxu0 %v133
    %163 = vmatpush.bf16.msra.mxu0 %v132
    %164 = vmatpush.bf16.msra.mxu0 %v131
    %165 = vmatpush.bf16.msra.mxu0 %v130
    %166 = vmatpush.bf16.msra.mxu0 %v129
    %167 = vmatpush.bf16.msra.mxu0 %v128
    %168 = vmatmul.bf16.gmra.mxu0 %v26
    %v169 = vpop.f32.mrf.mxu0
    %v170 = vadd.f32 %v62, %v169
    %v171 = vpop.f32.mrf.mxu0
    %v172 = vadd.f32 %v62, %v171
    %173 = vdwg.mxu0
    %174 = vmatpush.bf16.msra.mxu0 %v143
    %175 = vmatpush.bf16.msra.mxu0 %v142
    %176 = vmatpush.bf16.msra.mxu0 %v141
    %177 = vmatpush.bf16.msra.mxu0 %v140
    %178 = vmatpush.bf16.msra.mxu0 %v139
    %179 = vmatpush.bf16.msra.mxu0 %v138
    %180 = vmatpush.bf16.msra.mxu0 %v137
    %181 = vmatpush.bf16.msra.mxu0 %v136
    %182 = vmatmul.bf16.gmra.mxu0 %v27
    %v183 = vpop.f32.mrf.mxu0
    %v184 = vadd.f32 %v170, %v183
    %v185 = vpop.f32.mrf.mxu0
    %v186 = vadd.f32 %v172, %v185
    %187 = vdwg.mxu0
    %v188 = vtanh.pop %v184
    %v189 = vtanh.pop %v186
    %v190 = vpack.c.bf16 %v189, %v188
    %v191 = vld [vmem:[%s3] sm:$0xf]
    %v192 = vld [vmem:[%s3 + $0x4] sm:$0xf]
    %v193 = vld [vmem:[%s3 + $0x8] sm:$0xf]
    %v194 = vld [vmem:[%s3 + $0xc] sm:$0xf]
    %v195 = vld [vmem:[%s3 + $0x10] sm:$0xf]
    %v196 = vld [vmem:[%s3 + $0x14] sm:$0xf]
    %v197 = vld [vmem:[%s3 + $0x18] sm:$0xf]
    %v198 = vld [vmem:[%s3 + $0x1c] sm:$0xf]
    %v199 = vld [vmem:[%s4] sm:$0x1]
    %v201 = vperm.slane %v199, 0
    %v211 = vunpack.c.l.b16 %v191
    %v212 = vunpack.c.l.b16 %v192
    %v213 = vunpack.c.l.b16 %v193
    %v214 = vunpack.c.l.b16 %v194
    %v215 = vunpack.c.l.b16 %v195
    %v216 = vunpack.c.l.b16 %v196
    %v217 = vunpack.c.l.b16 %v197
    %v218 = vunpack.c.l.b16 %v198
    %v219 = vpack.c.b16 %v212, %v211
    %v220 = vpack.c.b16 %v214, %v213
    %v221 = vpack.c.b16 %v216, %v215
    %v222 = vpack.c.b16 %v218, %v217
    %vm227 = vcmask 523264
    %v229 = vsel %vm227, %v190, 0
    %231 = vmatpush.bf16.msra.mxu0 0
    %232 = vmatpush.bf16.msra.mxu0 0
    %233 = vmatpush.bf16.msra.mxu0 0
    %234 = vmatpush.bf16.msra.mxu0 0
    %235 = vmatpush.bf16.msra.mxu0 %v222
    %236 = vmatpush.bf16.msra.mxu0 %v221
    %237 = vmatpush.bf16.msra.mxu0 %v220
    %238 = vmatpush.bf16.msra.mxu0 %v219
    %239 = vmatmul.bf16.gmra.mxu0 %v229
    %v240 = vpop.f32.mrf.mxu0
    %v241 = vadd.f32 %v201, %v240
    %v242 = vpop.f32.mrf.mxu0
    %v243 = vadd.f32 %v201, %v242
    %244 = vdwg.mxu0
    %v245 = vtanh.pop %v241
    %v246 = vtanh.pop %v243
    %247 = vst.msk [vmem:[#allocation2] sm:$0xff] %vm227, %v245
    %248 = vst.msk [vmem:[#allocation2 + $0x8] sm:$0xff] %vm227, %v246
    // Predicated region
    $region22: #{tpu_custom_call.1} parent=1 // pred_check
      _
    $region23: #{tpu_custom_call.1} parent=1 // pred_check_branch
      %250 = sbr.rel (0) target = $region25
    $region24: #{tpu_custom_call.1} parent=1 // pred_region
      %252 = vsyncadd [#allocation3], 0
      %s253 = sshll.u32 [#allocation2], 4
      %s254 = int_to_ptr.vmem [resolvable:$true] %s253
      %s255 = sshll.u32 %s5, 4
      %s256 = int_to_ptr.hbm [resolvable:$true] %s255
      %261 = dma.vmem_to_hbm [thread:$0]  %s254, 256, %s256, [#allocation3], 128, 128, 8
    $region25: #{tpu_custom_call.1} parent=1 // pred_fallthru
      _
    // Predicated region
    $region26: #{tpu_custom_call.1} parent=1 // pred_check
      _
    $region27: #{tpu_custom_call.1} parent=1 // pred_check_branch
      %263 = sbr.rel (0) target = $region29
    $region28: #{tpu_custom_call.1} parent=1 // pred_region
      %265 = dma.done [#allocation3], 256
    $region29: #{tpu_custom_call.1} parent=1 // pred_fallthru
      _
    %266 = vsyncpa [#allocation3], 1

// kernel: tpu_custom_call.1
$region0: #{tpu_custom_call.1}
  #allocation0 [shape = 'u32[]', space=smem, size = 0x4, offset = 0x4, fixed_abs, tag = 'smem constant byte address 0x4 - core index']
  #allocation1 [shape = 'u32[72,128]{1,0:T(1,128)}', space=vmem, size = 0x9000, scoped, tag = 'internal scratch']
  %s0 = inlined_call_operand.vmem [shape: f32[16,256], index: 0, kind: input, shape index: {}]
  %s1 = inlined_call_operand.vmem [shape: bf16[256,64], index: 1, kind: input, shape index: {}]
  %s2 = inlined_call_operand.vmem [shape: f32[1,64], index: 2, kind: input, shape index: {}]
  %s3 = inlined_call_operand.vmem [shape: bf16[64,64], index: 3, kind: input, shape index: {}]
  %s4 = inlined_call_operand.vmem [shape: f32[1,64], index: 4, kind: input, shape index: {}]
  %s5 = inlined_call_operand.hbm [shape: f32[16,64], index: 5, kind: output, shape index: {}]
  %s6 = sld [smem:[#allocation0]]
  $region30: #{tpu_custom_call.1} parent=0
    _
  %s8 = ssub.s32 1, %s6
  %s9 = scalar_select 0, %s8, %s6
  $region1: #{tpu_custom_call.1} parent=0
    #allocation2 [shape = 'u8[8192]{0}', space=vmem, size = 0x2000, scoped, tag = 'output window, operand 0, single buffered']
    #allocation3 [shape = 's32[1]{0}', space=sflag, size = 0x4, scoped, tag = 'scoped memory for tpu_custom_call.1']
    %10 = vsyncpa [#allocation3], 0
    // Predicated region
    $region2: #{tpu_custom_call.1} parent=1 // pred_check
      _
    $region3: #{tpu_custom_call.1} parent=1 // pred_check_branch
      %12 = sbr.rel (0) target = $region5
    $region4: #{tpu_custom_call.1} parent=1 // pred_region
      _
    $region5: #{tpu_custom_call.1} parent=1 // pred_fallthru
      _
    // Predicated region
    $region6: #{tpu_custom_call.1} parent=1 // pred_check
      _
    $region7: #{tpu_custom_call.1} parent=1 // pred_check_branch
      %14 = sbr.rel (0) target = $region9
    $region8: #{tpu_custom_call.1} parent=1 // pred_region
      _
    $region9: #{tpu_custom_call.1} parent=1 // pred_fallthru
      _
    // Predicated region
    $region10: #{tpu_custom_call.1} parent=1 // pred_check
      _
    $region11: #{tpu_custom_call.1} parent=1 // pred_check_branch
      %16 = sbr.rel (0) target = $region13
    $region12: #{tpu_custom_call.1} parent=1 // pred_region
      _
    $region13: #{tpu_custom_call.1} parent=1 // pred_fallthru
      _
    // Predicated region
    $region14: #{tpu_custom_call.1} parent=1 // pred_check
      _
    $region15: #{tpu_custom_call.1} parent=1 // pred_check_branch
      %18 = sbr.rel (0) target = $region17
    $region16: #{tpu_custom_call.1} parent=1 // pred_region
      _
    $region17: #{tpu_custom_call.1} parent=1 // pred_fallthru
      _
    // Predicated region
    $region18: #{tpu_custom_call.1} parent=1 // pred_check
      _
    $region19: #{tpu_custom_call.1} parent=1 // pred_check_branch
      %20 = sbr.rel (0) target = $region21
    $region20: #{tpu_custom_call.1} parent=1 // pred_region
      _
    $region21: #{tpu_custom_call.1} parent=1 // pred_fallthru
      _
    %v22 = vld [vmem:[%s0] sm:$0xff]
    %v23 = vld [vmem:[%s0 + $0x8] sm:$0xff]
    %v24 = vld [vmem:[%s0 + $0x10] sm:$0xff]
    %v25 = vld [vmem:[%s0 + $0x18] sm:$0xff]
    %v26 = vpack.c.bf16 %v24, %v22
    %v27 = vpack.c.bf16 %v25, %v23
    %v28 = vld [vmem:[%s1] sm:$0xf]
    %v29 = vld [vmem:[%s1 + $0x4] sm:$0xf]
    %v30 = vld [vmem:[%s1 + $0x8] sm:$0xf]
    %v31 = vld [vmem:[%s1 + $0xc] sm:$0xf]
    %v32 = vld [vmem:[%s1 + $0x10] sm:$0xf]
    %v33 = vld [vmem:[%s1 + $0x14] sm:$0xf]
    %v34 = vld [vmem:[%s1 + $0x18] sm:$0xf]
    %v35 = vld [vmem:[%s1 + $0x1c] sm:$0xf]
    %v36 = vld [vmem:[%s1 + $0x20] sm:$0xf]
    %v37 = vld [vmem:[%s1 + $0x24] sm:$0xf]
    %v38 = vld [vmem:[%s1 + $0x28] sm:$0xf]
    %v39 = vld [vmem:[%s1 + $0x2c] sm:$0xf]
    %v40 = vld [vmem:[%s1 + $0x30] sm:$0xf]
    %v41 = vld [vmem:[%s1 + $0x34] sm:$0xf]
    %v42 = vld [vmem:[%s1 + $0x38] sm:$0xf]
    %v43 = vld [vmem:[%s1 + $0x3c] sm:$0xf]
    %v44 = vld [vmem:[%s1 + $0x40] sm:$0xf]
    %v45 = vld [vmem:[%s1 + $0x44] sm:$0xf]
    %v46 = vld [vmem:[%s1 + $0x48] sm:$0xf]
    %v47 = vld [vmem:[%s1 + $0x4c] sm:$0xf]
    %v48 = vld [vmem:[%s1 + $0x50] sm:$0xf]
    %v49 = vld [vmem:[%s1 + $0x54] sm:$0xf]
    %v50 = vld [vmem:[%s1 + $0x58] sm:$0xf]
    %v51 = vld [vmem:[%s1 + $0x5c] sm:$0xf]
    %v52 = vld [vmem:[%s1 + $0x60] sm:$0xf]
    %v53 = vld [vmem:[%s1 + $0x64] sm:$0xf]
    %v54 = vld [vmem:[%s1 + $0x68] sm:$0xf]
    %v55 = vld [vmem:[%s1 + $0x6c] sm:$0xf]
    %v56 = vld [vmem:[%s1 + $0x70] sm:$0xf]
    %v57 = vld [vmem:[%s1 + $0x74] sm:$0xf]
    %v58 = vld [vmem:[%s1 + $0x78] sm:$0xf]
    %v59 = vld [vmem:[%s1 + $0x7c] sm:$0xf]
    %v60 = vld [vmem:[%s2] sm:$0x1]
    %v62 = vperm.slane %v60, 0
    %v96 = vunpack.c.l.b16 %v28
    %v97 = vunpack.c.l.b16 %v29
    %v98 = vunpack.c.l.b16 %v30
    %v99 = vunpack.c.l.b16 %v31
    %v100 = vunpack.c.l.b16 %v32
    %v101 = vunpack.c.l.b16 %v33
    %v102 = vunpack.c.l.b16 %v34
    %v103 = vunpack.c.l.b16 %v35
    %v104 = vunpack.c.l.b16 %v36
    %v105 = vunpack.c.l.b16 %v37
    %v106 = vunpack.c.l.b16 %v38
    %v107 = vunpack.c.l.b16 %v39
    %v108 = vunpack.c.l.b16 %v40
    %v109 = vunpack.c.l.b16 %v41
    %v110 = vunpack.c.l.b16 %v42
    %v111 = vunpack.c.l.b16 %v43
    %v112 = vunpack.c.l.b16 %v44
    %v113 = vunpack.c.l.b16 %v45
    %v114 = vunpack.c.l.b16 %v46
    %v115 = vunpack.c.l.b16 %v47
    %v116 = vunpack.c.l.b16 %v48
    %v117 = vunpack.c.l.b16 %v49
    %v118 = vunpack.c.l.b16 %v50
    %v119 = vunpack.c.l.b16 %v51
    %v120 = vunpack.c.l.b16 %v52
    %v121 = vunpack.c.l.b16 %v53
    %v122 = vunpack.c.l.b16 %v54
    %v123 = vunpack.c.l.b16 %v55
    %v124 = vunpack.c.l.b16 %v56
    %v125 = vunpack.c.l.b16 %v57
    %v126 = vunpack.c.l.b16 %v58
    %v127 = vunpack.c.l.b16 %v59
    %v128 = vpack.c.b16 %v97, %v96
    %v129 = vpack.c.b16 %v99, %v98
    %v130 = vpack.c.b16 %v101, %v100
    %v131 = vpack.c.b16 %v103, %v102
    %v132 = vpack.c.b16 %v105, %v104
    %v133 = vpack.c.b16 %v107, %v106
    %v134 = vpack.c.b16 %v109, %v108
    %v135 = vpack.c.b16 %v111, %v110
    %v136 = vpack.c.b16 %v113, %v112
    %v137 = vpack.c.b16 %v115, %v114
    %v138 = vpack.c.b16 %v117, %v116
    %v139 = vpack.c.b16 %v119, %v118
    %v140 = vpack.c.b16 %v121, %v120
    %v141 = vpack.c.b16 %v123, %v122
    %v142 = vpack.c.b16 %v125, %v124
    %v143 = vpack.c.b16 %v127, %v126
    %160 = vmatpush.bf16.msra.mxu0 %v135
    %161 = vmatpush.bf16.msra.mxu0 %v134
    %162 = vmatpush.bf16.msra.mxu0 %v133
    %163 = vmatpush.bf16.msra.mxu0 %v132
    %164 = vmatpush.bf16.msra.mxu0 %v131
    %165 = vmatpush.bf16.msra.mxu0 %v130
    %166 = vmatpush.bf16.msra.mxu0 %v129
    %167 = vmatpush.bf16.msra.mxu0 %v128
    %168 = vmatmul.bf16.gmra.mxu0 %v26
    %v169 = vpop.f32.mrf.mxu0
    %v170 = vadd.f32 %v62, %v169
    %v171 = vpop.f32.mrf.mxu0
    %v172 = vadd.f32 %v62, %v171
    %173 = vdwg.mxu0
    %174 = vmatpush.bf16.msra.mxu0 %v143
    %175 = vmatpush.bf16.msra.mxu0 %v142
    %176 = vmatpush.bf16.msra.mxu0 %v141
    %177 = vmatpush.bf16.msra.mxu0 %v140
    %178 = vmatpush.bf16.msra.mxu0 %v139
    %179 = vmatpush.bf16.msra.mxu0 %v138
    %180 = vmatpush.bf16.msra.mxu0 %v137
    %181 = vmatpush.bf16.msra.mxu0 %v136
    %182 = vmatmul.bf16.gmra.mxu0 %v27
    %v183 = vpop.f32.mrf.mxu0
    %v184 = vadd.f32 %v170, %v183
    %v185 = vpop.f32.mrf.mxu0
    %v186 = vadd.f32 %v172, %v185
    %187 = vdwg.mxu0
    %v188 = vtanh.pop %v184
    %v189 = vtanh.pop %v186
    %v190 = vpack.c.bf16 %v189, %v188
    %v191 = vld [vmem:[%s3] sm:$0xf]
    %v192 = vld [vmem:[%s3 + $0x4] sm:$0xf]
    %v193 = vld [vmem:[%s3 + $0x8] sm:$0xf]
    %v194 = vld [vmem:[%s3 + $0xc] sm:$0xf]
    %v195 = vld [vmem:[%s3 + $0x10] sm:$0xf]
    %v196 = vld [vmem:[%s3 + $0x14] sm:$0xf]
    %v197 = vld [vmem:[%s3 + $0x18] sm:$0xf]
    %v198 = vld [vmem:[%s3 + $0x1c] sm:$0xf]
    %v199 = vld [vmem:[%s4] sm:$0x1]
    %v201 = vperm.slane %v199, 0
    %v211 = vunpack.c.l.b16 %v191
    %v212 = vunpack.c.l.b16 %v192
    %v213 = vunpack.c.l.b16 %v193
    %v214 = vunpack.c.l.b16 %v194
    %v215 = vunpack.c.l.b16 %v195
    %v216 = vunpack.c.l.b16 %v196
    %v217 = vunpack.c.l.b16 %v197
    %v218 = vunpack.c.l.b16 %v198
    %v219 = vpack.c.b16 %v212, %v211
    %v220 = vpack.c.b16 %v214, %v213
    %v221 = vpack.c.b16 %v216, %v215
    %v222 = vpack.c.b16 %v218, %v217
    %vm227 = vcmask 523264
    %v229 = vsel %vm227, %v190, 0
    %231 = vmatpush.bf16.msra.mxu0 0
    %232 = vmatpush.bf16.msra.mxu0 0
    %233 = vmatpush.bf16.msra.mxu0 0
    %234 = vmatpush.bf16.msra.mxu0 0
    %235 = vmatpush.bf16.msra.mxu0 %v222
    %236 = vmatpush.bf16.msra.mxu0 %v221
    %237 = vmatpush.bf16.msra.mxu0 %v220
    %238 = vmatpush.bf16.msra.mxu0 %v219
    %239 = vmatmul.bf16.gmra.mxu0 %v229
    %v240 = vpop.f32.mrf.mxu0
    %v241 = vadd.f32 %v201, %v240
    %v242 = vpop.f32.mrf.mxu0
    %v243 = vadd.f32 %v201, %v242
    %244 = vdwg.mxu0
    %v245 = vtanh.pop %v241
    %v246 = vtanh.pop %v243
    %247 = vst.msk [vmem:[#allocation2] sm:$0xff] %vm227, %v245
    %248 = vst.msk [vmem:[#allocation2 + $0x8] sm:$0xff] %vm227, %v246
    // Predicated region
    $region22: #{tpu_custom_call.1} parent=1 // pred_check
      _
    $region23: #{tpu_custom_call.1} parent=1 // pred_check_branch
      %250 = sbr.rel (0) target = $region25
    $region24: #{tpu_custom_call.1} parent=1 // pred_region
      %252 = vsyncadd [#allocation3], 0
      %s253 = sshll.u32 [#allocation2], 4
      %s254 = int_to_ptr.vmem [resolvable:$true] %s253
      %s255 = sshll.u32 %s5, 4
      %s256 = int_to_ptr.hbm [resolvable:$true] %s255
      %261 = dma.vmem_to_hbm [thread:$0]  %s254, 256, %s256, [#allocation3], 128, 128, 8
    $region25: #{tpu_custom_call.1} parent=1 // pred_fallthru
      _
    // Predicated region
    $region26: #{tpu_custom_call.1} parent=1 // pred_check
      _
    $region27: #{tpu_custom_call.1} parent=1 // pred_check_branch
      %263 = sbr.rel (0) target = $region29
    $region28: #{tpu_custom_call.1} parent=1 // pred_region
      %265 = dma.done [#allocation3], 256
    $region29: #{tpu_custom_call.1} parent=1 // pred_fallthru
      _
    %266 = vsyncpa [#allocation3], 1

</llo_original>
